<compile_context>
chip_gen: v7x
topology: tpu7x:2x2x1
jax: 0.10.0
libtpu: 0.0.40
codegen_flags: <defaults>
</compile_context>

<pallas_src>
import functools

import jax
import jax.numpy as jnp
from jax.experimental import pallas as pl
from jax.experimental.pallas import tpu as pltpu


def _lstm_fc_kernel(gx_ref, whh_ref, wfc_ref, bfc_ref, out_ref,
                    *, hidden_size, seq_len):
    """Single invocation: fori_loop over timesteps, then the FC head."""
    H = hidden_size
    B = gx_ref.shape[1]

    # Hoisted loads / constants (kept out of the recurrent loop).
    whh = whh_ref[...]                                     # (H, 4H)
    lane = jax.lax.broadcasted_iota(jnp.int32, (B, 4 * H), 1)
    is_g_lane = (lane >= 2 * H) & (lane < 3 * H)           # tanh block mask

    def step(t, carry):
        h, c = carry
        # gates: (B, 4H) in PyTorch order [i, f, g, o]
        gates = gx_ref[t] + jnp.dot(h, whh, preferred_element_type=jnp.float32)
        # Full-vreg activations: tanh on the g lanes, sigmoid everywhere else.
        act = jnp.where(is_g_lane, jnp.tanh(gates), jax.nn.sigmoid(gates))
        i_g = act[:, 0 * H:1 * H]
        f_g = act[:, 1 * H:2 * H]
        g_g = act[:, 2 * H:3 * H]
        o_g = act[:, 3 * H:4 * H]
        c_n = f_g * c + i_g * g_g
        h_n = o_g * jnp.tanh(c_n)
        return h_n, c_n

    h0 = jnp.zeros((B, H), jnp.float32)
    c0 = jnp.zeros((B, H), jnp.float32)
    h_T, _ = jax.lax.fori_loop(0, seq_len, step, (h0, c0), unroll=True)

    # dropout(eval) == identity;  fc: (B, H) @ (H, O_pad) + (1, O_pad)
    out_ref[...] = (jnp.dot(h_T, wfc_ref[...],
                            preferred_element_type=jnp.float32)
                    + bfc_ref[...])


def spy_lstm_forward(x, params):
    """x: (B, T, I) float32, batch_first like the PyTorch module."""
    B, T, I = x.shape
    wih_t = params["wih_t"]            # (I, 4H)
    whh_t = params["whh_t"]            # (H, 4H)
    b = params["b"]                    # (1, 4H)   (b_ih + b_hh)
    wfc_t = params["wfc_t"]            # (H, O)
    bfc = params["bfc"]                # (1, O)
    H = whh_t.shape[0]
    O = wfc_t.shape[1]

    # Hoisted input projection: one large MXU-friendly matmul over all T*B rows,
    # laid out time-major so the kernel indexes the leading (untiled) axis.
    gx = jnp.einsum("bti,ig->tbg", x, wih_t) + b            # (T, B, 4H)

    # Pad the FC head to a lane-dense 128-wide output; slice back afterwards.
    O_pad = max(128, ((O + 127) // 128) * 128)
    wfc_pad = jnp.zeros((H, O_pad), jnp.float32).at[:, :O].set(wfc_t)
    bfc_pad = jnp.zeros((1, O_pad), jnp.float32).at[:, :O].set(bfc)

    kernel = functools.partial(_lstm_fc_kernel, hidden_size=H, seq_len=T)

    out_pad = pl.pallas_call(
        kernel,
        out_shape=jax.ShapeDtypeStruct((B, O_pad), jnp.float32),
        grid_spec=pltpu.PrefetchScalarGridSpec(
            num_scalar_prefetch=0,
            grid=(1,),
            in_specs=[
                pl.BlockSpec((T, B, 4 * H), lambda i: (0, 0, 0)),  # gates_x slab
                pl.BlockSpec((H, 4 * H), lambda i: (0, 0)),        # W_hh^T
                pl.BlockSpec((H, O_pad), lambda i: (0, 0)),        # W_fc^T (padded)
                pl.BlockSpec((1, O_pad), lambda i: (0, 0)),        # b_fc  (padded)
            ],
            out_specs=pl.BlockSpec((B, O_pad), lambda i: (0, 0)),
        ),
        compiler_params=pltpu.CompilerParams(
            dimension_semantics=("arbitrary",),
        ),
    )(gx, whh_t, wfc_pad, bfc_pad)
    return out_pad[:, :O]


def init_params(key, input_size, hidden_size, output_size):
    """Deterministic PyTorch-style init (uniform +-1/sqrt(H))."""
    H, I, O = hidden_size, input_size, output_size
    ks = jax.random.split(key, 6)
    s = 1.0 / jnp.sqrt(jnp.float32(H))
    w_ih = jax.random.uniform(ks[0], (4 * H, I), jnp.float32, -s, s)
    w_hh = jax.random.uniform(ks[1], (4 * H, H), jnp.float32, -s, s)
    b_ih = jax.random.uniform(ks[2], (4 * H,), jnp.float32, -s, s)
    b_hh = jax.random.uniform(ks[3], (4 * H,), jnp.float32, -s, s)
    w_fc = jax.random.uniform(ks[4], (O, H), jnp.float32, -s, s)
    b_fc = jax.random.uniform(ks[5], (O,), jnp.float32, -s, s)
    return {
        "wih_t": w_ih.T,                       # (I, 4H)
        "whh_t": w_hh.T,                       # (H, 4H)
        "b": (b_ih + b_hh)[None, :],           # (1, 4H)
        "wfc_t": w_fc.T,                       # (H, O)
        "bfc": b_fc[None, :],                  # (1, O)
    }


def reference_forward(x, params):
    """Pure-JAX reference (lax.scan LSTM) for correctness check."""
    B, T, I = x.shape
    H = params["whh_t"].shape[0]
    h0 = jnp.zeros((B, H), jnp.float32)
    c0 = jnp.zeros((B, H), jnp.float32)

    def step(carry, x_t):
        h, c = carry
        gates = x_t @ params["wih_t"] + h @ params["whh_t"] + params["b"]
        i_g = jax.nn.sigmoid(gates[:, 0 * H:1 * H])
        f_g = jax.nn.sigmoid(gates[:, 1 * H:2 * H])
        g_g = jnp.tanh(gates[:, 2 * H:3 * H])
        o_g = jax.nn.sigmoid(gates[:, 3 * H:4 * H])
        c_n = f_g * c + i_g * g_g
        h_n = o_g * jnp.tanh(c_n)
        return (h_n, c_n), None

    (h_T, _), _ = jax.lax.scan(step, (h0, c0), jnp.transpose(x, (1, 0, 2)))
    return h_T @ params["wfc_t"] + params["bfc"]


if __name__ == "__main__":
    batch, seq, input_size = 8, 8, 4
    hidden_size, output_size = 32, 1

    key = jax.random.PRNGKey(0)
    k_x, k_p = jax.random.split(key)
    x = jax.random.normal(k_x, (batch, seq, input_size), jnp.float32)
    params = init_params(k_p, input_size, hidden_size, output_size)

    out = spy_lstm_forward(x, params)
    out = jax.block_until_ready(out)

    ref = reference_forward(x, params)
    assert out.shape == (batch, output_size)
    assert jnp.allclose(out, ref, atol=1e-5, rtol=1e-5), "mismatch vs reference"

    print("KERNEL_OK")
</pallas_src>

<mosaic_0001>
module attributes {stable_mosaic.version = 11 : i64} {
  func.func @_lstm_fc_kernel(%arg0: i32, %arg1: memref<8x8x128xf32, #tpu.memory_space<vmem>>, %arg2: memref<32x128xf32, #tpu.memory_space<vmem>>, %arg3: memref<32x128xf32, #tpu.memory_space<vmem>>, %arg4: memref<1x128xf32, #tpu.memory_space<vmem>>, %arg5: memref<8x128xf32, #tpu.memory_space<vmem>>) attributes {dimension_semantics = [#tpu.dimension_semantics<arbitrary>], iteration_bounds = array<i64: 1>, scalar_prefetch = 0 : i64, scratch_operands = 0 : i64, tpu.core_type = #tpu.core_type<tc>, window_params = [{pipeline_mode = #tpu.pipeline_mode<synchronous>, transform_indices = @transform_0, window_bounds = array<i64: 8, 8, 128>}, {pipeline_mode = #tpu.pipeline_mode<synchronous>, transform_indices = @transform_1, window_bounds = array<i64: 32, 128>}, {pipeline_mode = #tpu.pipeline_mode<synchronous>, transform_indices = @transform_2, window_bounds = array<i64: 32, 128>}, {pipeline_mode = #tpu.pipeline_mode<synchronous>, transform_indices = @transform_3, window_bounds = array<i64: 1, 128>}, {pipeline_mode = #tpu.pipeline_mode<synchronous>, transform_indices = @transform_4, window_bounds = array<i64: 8, 128>}]} {
    %c0 = arith.constant 0 : index
    %c0_0 = arith.constant 0 : index
    %0 = vector.load %arg2[%c0, %c0_0] : memref<32x128xf32, #tpu.memory_space<vmem>>, vector<32x128xf32>
    %1 = tpu.iota {dimensions = array<i32: 1>} : vector<8x128xi32>
    %c64_i32 = arith.constant 64 : i32
    %2 = vector.broadcast %c64_i32 : i32 to vector<8x128xi32>
    %3 = arith.cmpi sge, %1, %2 : vector<8x128xi32>
    %c96_i32 = arith.constant 96 : i32
    %4 = vector.broadcast %c96_i32 : i32 to vector<8x128xi32>
    %5 = arith.cmpi slt, %1, %4 : vector<8x128xi32>
    %6 = arith.andi %3, %5 : vector<8x128xi1>
    %cst = arith.constant 0.000000e+00 : f32
    %7 = vector.broadcast %cst : f32 to vector<8x32xf32>
    %cst_1 = arith.constant 0.000000e+00 : f32
    %8 = vector.broadcast %cst_1 : f32 to vector<8x32xf32>
    %c0_i32 = arith.constant 0 : i32
    %9 = arith.index_cast %c0_i32 : i32 to index
    %c0_2 = arith.constant 0 : index
    %c0_3 = arith.constant 0 : index
    %10 = vector.load %arg1[%9, %c0_2, %c0_3] : memref<8x8x128xf32, #tpu.memory_space<vmem>>, vector<1x8x128xf32>
    %11 = vector.shape_cast %10 : vector<1x8x128xf32> to vector<8x128xf32>
    %cst_4 = arith.constant dense<0.000000e+00> : vector<8x128xf32>
    %12 = tpu.matmul %7, %0, %cst_4 {dimension_numbers = #tpu.dot_dimension_numbers<[1], [0], [0], [1], [0, 0, 1, 1], [], []>} : vector<8x32xf32>, vector<32x128xf32>, vector<8x128xf32> -> vector<8x128xf32>
    %13 = arith.addf %11, %12 : vector<8x128xf32>
    %14 = math.tanh %13 : vector<8x128xf32>
    %15 = arith.negf %13 : vector<8x128xf32>
    %16 = math.exp %15 : vector<8x128xf32>
    %cst_5 = arith.constant 1.000000e+00 : f32
    %17 = vector.broadcast %cst_5 : f32 to vector<8x128xf32>
    %18 = arith.addf %17, %16 : vector<8x128xf32>
    %19 = arith.divf %17, %18 : vector<8x128xf32>
    %20 = arith.select %6, %14, %19 : vector<8x128xi1>, vector<8x128xf32>
    %21 = vector.extract_strided_slice %20 {offsets = [0, 0], sizes = [8, 32], strides = [1, 1]} : vector<8x128xf32> to vector<8x32xf32>
    %22 = vector.extract_strided_slice %20 {offsets = [0, 32], sizes = [8, 32], strides = [1, 1]} : vector<8x128xf32> to vector<8x32xf32>
    %23 = vector.extract_strided_slice %20 {offsets = [0, 64], sizes = [8, 32], strides = [1, 1]} : vector<8x128xf32> to vector<8x32xf32>
    %24 = vector.extract_strided_slice %20 {offsets = [0, 96], sizes = [8, 32], strides = [1, 1]} : vector<8x128xf32> to vector<8x32xf32>
    %25 = arith.mulf %22, %8 : vector<8x32xf32>
    %26 = arith.mulf %21, %23 : vector<8x32xf32>
    %27 = arith.addf %25, %26 : vector<8x32xf32>
    %28 = math.tanh %27 : vector<8x32xf32>
    %29 = arith.mulf %24, %28 : vector<8x32xf32>
    %c1_i32 = arith.constant 1 : i32
    %30 = arith.index_cast %c1_i32 : i32 to index
    %c0_6 = arith.constant 0 : index
    %c0_7 = arith.constant 0 : index
    %31 = vector.load %arg1[%30, %c0_6, %c0_7] : memref<8x8x128xf32, #tpu.memory_space<vmem>>, vector<1x8x128xf32>
    %32 = vector.shape_cast %31 : vector<1x8x128xf32> to vector<8x128xf32>
    %cst_8 = arith.constant dense<0.000000e+00> : vector<8x128xf32>
    %33 = tpu.matmul %29, %0, %cst_8 {dimension_numbers = #tpu.dot_dimension_numbers<[1], [0], [0], [1], [0, 0, 1, 1], [], []>} : vector<8x32xf32>, vector<32x128xf32>, vector<8x128xf32> -> vector<8x128xf32>
    %34 = arith.addf %32, %33 : vector<8x128xf32>
    %35 = math.tanh %34 : vector<8x128xf32>
    %36 = arith.negf %34 : vector<8x128xf32>
    %37 = math.exp %36 : vector<8x128xf32>
    %cst_9 = arith.constant 1.000000e+00 : f32
    %38 = vector.broadcast %cst_9 : f32 to vector<8x128xf32>
    %39 = arith.addf %38, %37 : vector<8x128xf32>
    %40 = arith.divf %38, %39 : vector<8x128xf32>
    %41 = arith.select %6, %35, %40 : vector<8x128xi1>, vector<8x128xf32>
    %42 = vector.extract_strided_slice %41 {offsets = [0, 0], sizes = [8, 32], strides = [1, 1]} : vector<8x128xf32> to vector<8x32xf32>
    %43 = vector.extract_strided_slice %41 {offsets = [0, 32], sizes = [8, 32], strides = [1, 1]} : vector<8x128xf32> to vector<8x32xf32>
    %44 = vector.extract_strided_slice %41 {offsets = [0, 64], sizes = [8, 32], strides = [1, 1]} : vector<8x128xf32> to vector<8x32xf32>
    %45 = vector.extract_strided_slice %41 {offsets = [0, 96], sizes = [8, 32], strides = [1, 1]} : vector<8x128xf32> to vector<8x32xf32>
    %46 = arith.mulf %43, %27 : vector<8x32xf32>
    %47 = arith.mulf %42, %44 : vector<8x32xf32>
    %48 = arith.addf %46, %47 : vector<8x32xf32>
    %49 = math.tanh %48 : vector<8x32xf32>
    %50 = arith.mulf %45, %49 : vector<8x32xf32>
    %c2_i32 = arith.constant 2 : i32
    %51 = arith.index_cast %c2_i32 : i32 to index
    %c0_10 = arith.constant 0 : index
    %c0_11 = arith.constant 0 : index
    %52 = vector.load %arg1[%51, %c0_10, %c0_11] : memref<8x8x128xf32, #tpu.memory_space<vmem>>, vector<1x8x128xf32>
    %53 = vector.shape_cast %52 : vector<1x8x128xf32> to vector<8x128xf32>
    %cst_12 = arith.constant dense<0.000000e+00> : vector<8x128xf32>
    %54 = tpu.matmul %50, %0, %cst_12 {dimension_numbers = #tpu.dot_dimension_numbers<[1], [0], [0], [1], [0, 0, 1, 1], [], []>} : vector<8x32xf32>, vector<32x128xf32>, vector<8x128xf32> -> vector<8x128xf32>
    %55 = arith.addf %53, %54 : vector<8x128xf32>
    %56 = math.tanh %55 : vector<8x128xf32>
    %57 = arith.negf %55 : vector<8x128xf32>
    %58 = math.exp %57 : vector<8x128xf32>
    %cst_13 = arith.constant 1.000000e+00 : f32
    %59 = vector.broadcast %cst_13 : f32 to vector<8x128xf32>
    %60 = arith.addf %59, %58 : vector<8x128xf32>
    %61 = arith.divf %59, %60 : vector<8x128xf32>
    %62 = arith.select %6, %56, %61 : vector<8x128xi1>, vector<8x128xf32>
    %63 = vector.extract_strided_slice %62 {offsets = [0, 0], sizes = [8, 32], strides = [1, 1]} : vector<8x128xf32> to vector<8x32xf32>
    %64 = vector.extract_strided_slice %62 {offsets = [0, 32], sizes = [8, 32], strides = [1, 1]} : vector<8x128xf32> to vector<8x32xf32>
    %65 = vector.extract_strided_slice %62 {offsets = [0, 64], sizes = [8, 32], strides = [1, 1]} : vector<8x128xf32> to vector<8x32xf32>
    %66 = vector.extract_strided_slice %62 {offsets = [0, 96], sizes = [8, 32], strides = [1, 1]} : vector<8x128xf32> to vector<8x32xf32>
    %67 = arith.mulf %64, %48 : vector<8x32xf32>
    %68 = arith.mulf %63, %65 : vector<8x32xf32>
    %69 = arith.addf %67, %68 : vector<8x32xf32>
    %70 = math.tanh %69 : vector<8x32xf32>
    %71 = arith.mulf %66, %70 : vector<8x32xf32>
    %c3_i32 = arith.constant 3 : i32
    %72 = arith.index_cast %c3_i32 : i32 to index
    %c0_14 = arith.constant 0 : index
    %c0_15 = arith.constant 0 : index
    %73 = vector.load %arg1[%72, %c0_14, %c0_15] : memref<8x8x128xf32, #tpu.memory_space<vmem>>, vector<1x8x128xf32>
    %74 = vector.shape_cast %73 : vector<1x8x128xf32> to vector<8x128xf32>
    %cst_16 = arith.constant dense<0.000000e+00> : vector<8x128xf32>
    %75 = tpu.matmul %71, %0, %cst_16 {dimension_numbers = #tpu.dot_dimension_numbers<[1], [0], [0], [1], [0, 0, 1, 1], [], []>} : vector<8x32xf32>, vector<32x128xf32>, vector<8x128xf32> -> vector<8x128xf32>
    %76 = arith.addf %74, %75 : vector<8x128xf32>
    %77 = math.tanh %76 : vector<8x128xf32>
    %78 = arith.negf %76 : vector<8x128xf32>
    %79 = math.exp %78 : vector<8x128xf32>
    %cst_17 = arith.constant 1.000000e+00 : f32
    %80 = vector.broadcast %cst_17 : f32 to vector<8x128xf32>
    %81 = arith.addf %80, %79 : vector<8x128xf32>
    %82 = arith.divf %80, %81 : vector<8x128xf32>
    %83 = arith.select %6, %77, %82 : vector<8x128xi1>, vector<8x128xf32>
    %84 = vector.extract_strided_slice %83 {offsets = [0, 0], sizes = [8, 32], strides = [1, 1]} : vector<8x128xf32> to vector<8x32xf32>
    %85 = vector.extract_strided_slice %83 {offsets = [0, 32], sizes = [8, 32], strides = [1, 1]} : vector<8x128xf32> to vector<8x32xf32>
    %86 = vector.extract_strided_slice %83 {offsets = [0, 64], sizes = [8, 32], strides = [1, 1]} : vector<8x128xf32> to vector<8x32xf32>
    %87 = vector.extract_strided_slice %83 {offsets = [0, 96], sizes = [8, 32], strides = [1, 1]} : vector<8x128xf32> to vector<8x32xf32>
    %88 = arith.mulf %85, %69 : vector<8x32xf32>
    %89 = arith.mulf %84, %86 : vector<8x32xf32>
    %90 = arith.addf %88, %89 : vector<8x32xf32>
    %91 = math.tanh %90 : vector<8x32xf32>
    %92 = arith.mulf %87, %91 : vector<8x32xf32>
    %c4_i32 = arith.constant 4 : i32
    %93 = arith.index_cast %c4_i32 : i32 to index
    %c0_18 = arith.constant 0 : index
    %c0_19 = arith.constant 0 : index
    %94 = vector.load %arg1[%93, %c0_18, %c0_19] : memref<8x8x128xf32, #tpu.memory_space<vmem>>, vector<1x8x128xf32>
    %95 = vector.shape_cast %94 : vector<1x8x128xf32> to vector<8x128xf32>
    %cst_20 = arith.constant dense<0.000000e+00> : vector<8x128xf32>
    %96 = tpu.matmul %92, %0, %cst_20 {dimension_numbers = #tpu.dot_dimension_numbers<[1], [0], [0], [1], [0, 0, 1, 1], [], []>} : vector<8x32xf32>, vector<32x128xf32>, vector<8x128xf32> -> vector<8x128xf32>
    %97 = arith.addf %95, %96 : vector<8x128xf32>
    %98 = math.tanh %97 : vector<8x128xf32>
    %99 = arith.negf %97 : vector<8x128xf32>
    %100 = math.exp %99 : vector<8x128xf32>
    %cst_21 = arith.constant 1.000000e+00 : f32
    %101 = vector.broadcast %cst_21 : f32 to vector<8x128xf32>
    %102 = arith.addf %101, %100 : vector<8x128xf32>
    %103 = arith.divf %101, %102 : vector<8x128xf32>
    %104 = arith.select %6, %98, %103 : vector<8x128xi1>, vector<8x128xf32>
    %105 = vector.extract_strided_slice %104 {offsets = [0, 0], sizes = [8, 32], strides = [1, 1]} : vector<8x128xf32> to vector<8x32xf32>
    %106 = vector.extract_strided_slice %104 {offsets = [0, 32], sizes = [8, 32], strides = [1, 1]} : vector<8x128xf32> to vector<8x32xf32>
    %107 = vector.extract_strided_slice %104 {offsets = [0, 64], sizes = [8, 32], strides = [1, 1]} : vector<8x128xf32> to vector<8x32xf32>
    %108 = vector.extract_strided_slice %104 {offsets = [0, 96], sizes = [8, 32], strides = [1, 1]} : vector<8x128xf32> to vector<8x32xf32>
    %109 = arith.mulf %106, %90 : vector<8x32xf32>
    %110 = arith.mulf %105, %107 : vector<8x32xf32>
    %111 = arith.addf %109, %110 : vector<8x32xf32>
    %112 = math.tanh %111 : vector<8x32xf32>
    %113 = arith.mulf %108, %112 : vector<8x32xf32>
    %c5_i32 = arith.constant 5 : i32
    %114 = arith.index_cast %c5_i32 : i32 to index
    %c0_22 = arith.constant 0 : index
    %c0_23 = arith.constant 0 : index
    %115 = vector.load %arg1[%114, %c0_22, %c0_23] : memref<8x8x128xf32, #tpu.memory_space<vmem>>, vector<1x8x128xf32>
    %116 = vector.shape_cast %115 : vector<1x8x128xf32> to vector<8x128xf32>
    %cst_24 = arith.constant dense<0.000000e+00> : vector<8x128xf32>
    %117 = tpu.matmul %113, %0, %cst_24 {dimension_numbers = #tpu.dot_dimension_numbers<[1], [0], [0], [1], [0, 0, 1, 1], [], []>} : vector<8x32xf32>, vector<32x128xf32>, vector<8x128xf32> -> vector<8x128xf32>
    %118 = arith.addf %116, %117 : vector<8x128xf32>
    %119 = math.tanh %118 : vector<8x128xf32>
    %120 = arith.negf %118 : vector<8x128xf32>
    %121 = math.exp %120 : vector<8x128xf32>
    %cst_25 = arith.constant 1.000000e+00 : f32
    %122 = vector.broadcast %cst_25 : f32 to vector<8x128xf32>
    %123 = arith.addf %122, %121 : vector<8x128xf32>
    %124 = arith.divf %122, %123 : vector<8x128xf32>
    %125 = arith.select %6, %119, %124 : vector<8x128xi1>, vector<8x128xf32>
    %126 = vector.extract_strided_slice %125 {offsets = [0, 0], sizes = [8, 32], strides = [1, 1]} : vector<8x128xf32> to vector<8x32xf32>
    %127 = vector.extract_strided_slice %125 {offsets = [0, 32], sizes = [8, 32], strides = [1, 1]} : vector<8x128xf32> to vector<8x32xf32>
    %128 = vector.extract_strided_slice %125 {offsets = [0, 64], sizes = [8, 32], strides = [1, 1]} : vector<8x128xf32> to vector<8x32xf32>
    %129 = vector.extract_strided_slice %125 {offsets = [0, 96], sizes = [8, 32], strides = [1, 1]} : vector<8x128xf32> to vector<8x32xf32>
    %130 = arith.mulf %127, %111 : vector<8x32xf32>
    %131 = arith.mulf %126, %128 : vector<8x32xf32>
    %132 = arith.addf %130, %131 : vector<8x32xf32>
    %133 = math.tanh %132 : vector<8x32xf32>
    %134 = arith.mulf %129, %133 : vector<8x32xf32>
    %c6_i32 = arith.constant 6 : i32
    %135 = arith.index_cast %c6_i32 : i32 to index
    %c0_26 = arith.constant 0 : index
    %c0_27 = arith.constant 0 : index
    %136 = vector.load %arg1[%135, %c0_26, %c0_27] : memref<8x8x128xf32, #tpu.memory_space<vmem>>, vector<1x8x128xf32>
    %137 = vector.shape_cast %136 : vector<1x8x128xf32> to vector<8x128xf32>
    %cst_28 = arith.constant dense<0.000000e+00> : vector<8x128xf32>
    %138 = tpu.matmul %134, %0, %cst_28 {dimension_numbers = #tpu.dot_dimension_numbers<[1], [0], [0], [1], [0, 0, 1, 1], [], []>} : vector<8x32xf32>, vector<32x128xf32>, vector<8x128xf32> -> vector<8x128xf32>
    %139 = arith.addf %137, %138 : vector<8x128xf32>
    %140 = math.tanh %139 : vector<8x128xf32>
    %141 = arith.negf %139 : vector<8x128xf32>
    %142 = math.exp %141 : vector<8x128xf32>
    %cst_29 = arith.constant 1.000000e+00 : f32
    %143 = vector.broadcast %cst_29 : f32 to vector<8x128xf32>
    %144 = arith.addf %143, %142 : vector<8x128xf32>
    %145 = arith.divf %143, %144 : vector<8x128xf32>
    %146 = arith.select %6, %140, %145 : vector<8x128xi1>, vector<8x128xf32>
    %147 = vector.extract_strided_slice %146 {offsets = [0, 0], sizes = [8, 32], strides = [1, 1]} : vector<8x128xf32> to vector<8x32xf32>
    %148 = vector.extract_strided_slice %146 {offsets = [0, 32], sizes = [8, 32], strides = [1, 1]} : vector<8x128xf32> to vector<8x32xf32>
    %149 = vector.extract_strided_slice %146 {offsets = [0, 64], sizes = [8, 32], strides = [1, 1]} : vector<8x128xf32> to vector<8x32xf32>
    %150 = vector.extract_strided_slice %146 {offsets = [0, 96], sizes = [8, 32], strides = [1, 1]} : vector<8x128xf32> to vector<8x32xf32>
    %151 = arith.mulf %148, %132 : vector<8x32xf32>
    %152 = arith.mulf %147, %149 : vector<8x32xf32>
    %153 = arith.addf %151, %152 : vector<8x32xf32>
    %154 = math.tanh %153 : vector<8x32xf32>
    %155 = arith.mulf %150, %154 : vector<8x32xf32>
    %c7_i32 = arith.constant 7 : i32
    %156 = arith.index_cast %c7_i32 : i32 to index
    %c0_30 = arith.constant 0 : index
    %c0_31 = arith.constant 0 : index
    %157 = vector.load %arg1[%156, %c0_30, %c0_31] : memref<8x8x128xf32, #tpu.memory_space<vmem>>, vector<1x8x128xf32>
    %158 = vector.shape_cast %157 : vector<1x8x128xf32> to vector<8x128xf32>
    %cst_32 = arith.constant dense<0.000000e+00> : vector<8x128xf32>
    %159 = tpu.matmul %155, %0, %cst_32 {dimension_numbers = #tpu.dot_dimension_numbers<[1], [0], [0], [1], [0, 0, 1, 1], [], []>} : vector<8x32xf32>, vector<32x128xf32>, vector<8x128xf32> -> vector<8x128xf32>
    %160 = arith.addf %158, %159 : vector<8x128xf32>
    %161 = math.tanh %160 : vector<8x128xf32>
    %162 = arith.negf %160 : vector<8x128xf32>
    %163 = math.exp %162 : vector<8x128xf32>
    %cst_33 = arith.constant 1.000000e+00 : f32
    %164 = vector.broadcast %cst_33 : f32 to vector<8x128xf32>
    %165 = arith.addf %164, %163 : vector<8x128xf32>
    %166 = arith.divf %164, %165 : vector<8x128xf32>
    %167 = arith.select %6, %161, %166 : vector<8x128xi1>, vector<8x128xf32>
    %168 = vector.extract_strided_slice %167 {offsets = [0, 0], sizes = [8, 32], strides = [1, 1]} : vector<8x128xf32> to vector<8x32xf32>
    %169 = vector.extract_strided_slice %167 {offsets = [0, 32], sizes = [8, 32], strides = [1, 1]} : vector<8x128xf32> to vector<8x32xf32>
    %170 = vector.extract_strided_slice %167 {offsets = [0, 64], sizes = [8, 32], strides = [1, 1]} : vector<8x128xf32> to vector<8x32xf32>
    %171 = vector.extract_strided_slice %167 {offsets = [0, 96], sizes = [8, 32], strides = [1, 1]} : vector<8x128xf32> to vector<8x32xf32>
    %172 = arith.mulf %169, %153 : vector<8x32xf32>
    %173 = arith.mulf %168, %170 : vector<8x32xf32>
    %174 = arith.addf %172, %173 : vector<8x32xf32>
    %175 = math.tanh %174 : vector<8x32xf32>
    %176 = arith.mulf %171, %175 : vector<8x32xf32>
    %c8_i32 = arith.constant 8 : i32
    %c0_34 = arith.constant 0 : index
    %c0_35 = arith.constant 0 : index
    %177 = vector.load %arg3[%c0_34, %c0_35] : memref<32x128xf32, #tpu.memory_space<vmem>>, vector<32x128xf32>
    %cst_36 = arith.constant dense<0.000000e+00> : vector<8x128xf32>
    %178 = tpu.matmul %176, %177, %cst_36 {dimension_numbers = #tpu.dot_dimension_numbers<[1], [0], [0], [1], [0, 0, 1, 1], [], []>} : vector<8x32xf32>, vector<32x128xf32>, vector<8x128xf32> -> vector<8x128xf32>
    %c0_37 = arith.constant 0 : index
    %c0_38 = arith.constant 0 : index
    %179 = vector.load %arg4[%c0_37, %c0_38] : memref<1x128xf32, #tpu.memory_space<vmem>>, vector<1x128xf32>
    %180 = vector.broadcast %179 : vector<1x128xf32> to vector<8x128xf32>
    %181 = arith.addf %178, %180 : vector<8x128xf32>
    %c0_39 = arith.constant 0 : index
    %c0_40 = arith.constant 0 : index
    %182 = vector.load %arg5[%c0_39, %c0_40] : memref<8x128xf32, #tpu.memory_space<vmem>>, vector<8x128xf32>
    tpu.vector_store %arg5[%c0_39, %c0_40], %181 {strides = array<i32>} : memref<8x128xf32, #tpu.memory_space<vmem>>, vector<8x128xf32>,
    return
  }
  func.func @transform_0(%arg0: i32) -> (i32, i32, i32) {
    %c0_i32 = arith.constant 0 : i32
    %c0_i32_0 = arith.constant 0 : i32
    %c0_i32_1 = arith.constant 0 : i32
    %c0_i32_2 = arith.constant 0 : i32
    return %c0_i32, %c0_i32_0, %c0_i32_1 : i32, i32, i32
  }
  func.func @transform_1(%arg0: i32) -> (i32, i32) {
    %c0_i32 = arith.constant 0 : i32
    %c0_i32_0 = arith.constant 0 : i32
    %c0_i32_1 = arith.constant 0 : i32
    return %c0_i32, %c0_i32_0 : i32, i32
  }
  func.func @transform_2(%arg0: i32) -> (i32, i32) {
    %c0_i32 = arith.constant 0 : i32
    %c0_i32_0 = arith.constant 0 : i32
    %c0_i32_1 = arith.constant 0 : i32
    return %c0_i32, %c0_i32_0 : i32, i32
  }
  func.func @transform_3(%arg0: i32) -> (i32, i32) {
    %c0_i32 = arith.constant 0 : i32
    %c0_i32_0 = arith.constant 0 : i32
    %c0_i32_1 = arith.constant 0 : i32
    return %c0_i32, %c0_i32_0 : i32, i32
  }
  func.func @transform_4(%arg0: i32) -> (i32, i32) {
    %c0_i32 = arith.constant 0 : i32
    %c0_i32_0 = arith.constant 0 : i32
    %c0_i32_1 = arith.constant 0 : i32
    return %c0_i32, %c0_i32_0 : i32, i32
  }
}

</mosaic_0001>

<llo_original>
// kernel: tpu_custom_call.1
$region0: #{tpu_custom_call.1}
  #allocation0 [shape = 'u32[]', space=smem, size = 0x4, offset = 0x4, fixed_abs, tag = 'smem constant byte address 0x4 - core index']
  #allocation1 [shape = 'u32[144,128]{1,0:T(1,128)}', space=vmem, size = 0x12000, scoped, tag = 'internal scratch']
  %s0 = inlined_call_operand.hbm [shape: f32[8,8,128], index: 0, kind: input, shape index: {}]
  %s1 = inlined_call_operand.hbm [shape: f32[32,128], index: 1, kind: input, shape index: {}]
  %s2 = inlined_call_operand.hbm [shape: f32[32,128], index: 2, kind: input, shape index: {}]
  %s3 = inlined_call_operand.vmem [shape: f32[1,128], index: 3, kind: input, shape index: {}]
  %s4 = inlined_call_operand.hbm [shape: f32[8,128], index: 4, kind: output, shape index: {}]
  %s5 = sld [smem:[#allocation0]]
  $region38: #{tpu_custom_call.1} parent=0
    _
  %s7 = ssub.s32 1, %s5
  %s8 = scalar_select 0, %s7, %s5
  $region1: #{tpu_custom_call.1} parent=0
    #allocation2 [shape = 'u8[32768]{0}', space=vmem, size = 0x8000, scoped, tag = 'input window, operand 0, single buffered']
    #allocation3 [shape = 's32[1]{0}', space=sflag, size = 0x4, scoped, tag = 'scoped memory for tpu_custom_call.1']
    #allocation4 [shape = 's32[1]{0}', space=sflag, size = 0x4, scoped, tag = 'scoped memory for tpu_custom_call.1']
    #allocation5 [shape = 'u8[16384]{0}', space=vmem, size = 0x4000, scoped, tag = 'input window, operand 1, single buffered']
    #allocation6 [shape = 's32[1]{0}', space=sflag, size = 0x4, scoped, tag = 'scoped memory for tpu_custom_call.1']
    #allocation7 [shape = 'u8[16384]{0}', space=vmem, size = 0x4000, scoped, tag = 'input window, operand 2, single buffered']
    #allocation8 [shape = 'u8[4096]{0}', space=vmem, size = 0x1000, scoped, tag = 'output window, operand 0, single buffered']
    %9 = vsyncpa [#allocation3], 0
    %10 = vsyncpa [#allocation6], 0
    %11 = vsyncpa [#allocation4], 0
    // Predicated region
    $region2: #{tpu_custom_call.1} parent=1 // pred_check
      _
    $region3: #{tpu_custom_call.1} parent=1 // pred_check_branch
      %13 = sbr.rel (0) target = $region5
    $region4: #{tpu_custom_call.1} parent=1 // pred_region
      %s15 = ssub.s32 1024, 1024
      %16 = vsyncadd [#allocation3], %s15
      %s17 = sshll.u32 [#allocation2], 4
      %s18 = int_to_ptr.vmem [resolvable:$true] %s17
      %23 = dma.hbm_to_vmem [thread:$0]  %s0, 1024, %s18, [#allocation3], 128, 128, 8
    $region5: #{tpu_custom_call.1} parent=1 // pred_fallthru
      _
    // Predicated region
    $region6: #{tpu_custom_call.1} parent=1 // pred_check
      _
    $region7: #{tpu_custom_call.1} parent=1 // pred_check_branch
      %25 = sbr.rel (0) target = $region9
    $region8: #{tpu_custom_call.1} parent=1 // pred_region
      %s27 = ssub.s32 512, 512
      %28 = vsyncadd [#allocation6], %s27
      %s29 = sshll.u32 [#allocation5], 4
      %s30 = int_to_ptr.vmem [resolvable:$true] %s29
      %35 = dma.hbm_to_vmem [thread:$0]  %s1, 512, %s30, [#allocation6], 128, 128, 8
    $region9: #{tpu_custom_call.1} parent=1 // pred_fallthru
      _
    // Predicated region
    $region10: #{tpu_custom_call.1} parent=1 // pred_check
      _
    $region11: #{tpu_custom_call.1} parent=1 // pred_check_branch
      %37 = sbr.rel (0) target = $region13
    $region12: #{tpu_custom_call.1} parent=1 // pred_region
      %s39 = ssub.s32 512, 512
      %40 = vsyncadd [#allocation6], %s39
      %s41 = sshll.u32 [#allocation7], 4
      %s42 = int_to_ptr.vmem [resolvable:$true] %s41
      %47 = dma.hbm_to_vmem [thread:$0]  %s2, 512, %s42, [#allocation6], 128, 128, 8
    $region13: #{tpu_custom_call.1} parent=1 // pred_fallthru
      _
    // Predicated region
    $region14: #{tpu_custom_call.1} parent=1 // pred_check
      _
    $region15: #{tpu_custom_call.1} parent=1 // pred_check_branch
      %49 = sbr.rel (0) target = $region17
    $region16: #{tpu_custom_call.1} parent=1 // pred_region
      _
    $region17: #{tpu_custom_call.1} parent=1 // pred_fallthru
      _
    // Predicated region
    $region18: #{tpu_custom_call.1} parent=1 // pred_check
      _
    $region19: #{tpu_custom_call.1} parent=1 // pred_check_branch
      %51 = sbr.rel (0) target = $region21
    $region20: #{tpu_custom_call.1} parent=1 // pred_region
      %52 = dma.done [#allocation3], 1024
    $region21: #{tpu_custom_call.1} parent=1 // pred_fallthru
      _
    // Predicated region
    $region22: #{tpu_custom_call.1} parent=1 // pred_check
      _
    $region23: #{tpu_custom_call.1} parent=1 // pred_check_branch
      %54 = sbr.rel (0) target = $region25
    $region24: #{tpu_custom_call.1} parent=1 // pred_region
      %55 = dma.done [#allocation6], 512
    $region25: #{tpu_custom_call.1} parent=1 // pred_fallthru
      _
    // Predicated region
    $region26: #{tpu_custom_call.1} parent=1 // pred_check
      _
    $region27: #{tpu_custom_call.1} parent=1 // pred_check_branch
      %57 = sbr.rel (0) target = $region29
    $region28: #{tpu_custom_call.1} parent=1 // pred_region
      %58 = dma.done [#allocation6], 512
    $region29: #{tpu_custom_call.1} parent=1 // pred_fallthru
      _
    %v59 = vld [vmem:[#allocation5] sm:$0xff]
    %v60 = vld [vmem:[#allocation5 + $0x8] sm:$0xff]
    %v61 = vld [vmem:[#allocation5 + $0x10] sm:$0xff]
    %v62 = vld [vmem:[#allocation5 + $0x18] sm:$0xff]
    %v63 = vlaneseq
    %v64 = vand.u32 %v63, 127
    %vm65 = vcmp.ge.s32.totalorder %v64, 64
    %vm66 = vcmp.lt.s32.totalorder %v64, 96
    %vm67 = vmand %vm65, %vm66
    %v68 = vld [vmem:[#allocation2] sm:$0xff]
    %vm69 = vcmask 261120
    %v71 = vsel %vm69, 0.0, 0
    %73 = vmatprep.subr.mxu0 0.0
    %74 = vmatpush1.msra.mxu0 %v59
    %75 = vmatprep.subr.mxu0 0.0
    %76 = vmatpush1.msra.mxu0 %v60
    %77 = vmatprep.subr.mxu0 0.0
    %78 = vmatpush1.msra.mxu0 %v61
    %79 = vmatprep.subr.mxu0 0.0
    %80 = vmatpush1.msra.mxu0 %v62
    %81 = vmatprep.subr.mxu0 0.0
    %82 = vmatpush1.msra.mxu0 0.0
    %83 = vmatprep.subr.mxu0 0.0
    %84 = vmatpush1.msra.mxu0 0.0
    %85 = vmatprep.subr.mxu0 0.0
    %86 = vmatpush1.msra.mxu0 0.0
    %87 = vmatprep.subr.mxu0 0.0
    %88 = vmatpush1.msra.mxu0 0.0
    %89 = vmatprep.subr.mxu0 0.0
    %90 = vmatpush1.msra.mxu0 0.0
    %91 = vmatprep.subr.mxu0 0.0
    %92 = vmatpush1.msra.mxu0 0.0
    %93 = vmatprep.subr.mxu0 0.0
    %94 = vmatpush1.msra.mxu0 0.0
    %95 = vmatprep.subr.mxu0 0.0
    %96 = vmatpush1.msra.mxu0 0.0
    %97 = vmatprep.subr.mxu0 0.0
    %98 = vmatpush1.msra.mxu0 0.0
    %99 = vmatprep.subr.mxu0 0.0
    %100 = vmatpush1.msra.mxu0 0.0
    %101 = vmatprep.subr.mxu0 0.0
    %102 = vmatpush1.msra.mxu0 0.0
    %103 = vmatprep.subr.mxu0 0.0
    %104 = vmatpush1.msra.mxu0 0.0
    %105 = vmatprep.subr.mxu0 0.0
    %106 = vmatpush1.msra.mxu0 0.0
    %107 = vmatprep.subr.mxu0 0.0
    %108 = vmatpush1.msra.mxu0 0.0
    %109 = vmatprep.subr.mxu0 0.0
    %110 = vmatpush1.msra.mxu0 0.0
    %111 = vmatprep.subr.mxu0 0.0
    %112 = vmatpush1.msra.mxu0 0.0
    %113 = vmatprep.subr.mxu0 0.0
    %114 = vmatpush1.msra.mxu0 0.0
    %115 = vmatprep.subr.mxu0 0.0
    %116 = vmatpush1.msra.mxu0 0.0
    %117 = vmatprep.subr.mxu0 0.0
    %118 = vmatpush1.msra.mxu0 0.0
    %119 = vmatprep.subr.mxu0 0.0
    %120 = vmatpush1.msra.mxu0 0.0
    %121 = vmatprep.subr.mxu0 0.0
    %122 = vmatpush1.msra.mxu0 0.0
    %123 = vmatprep.subr.mxu0 0.0
    %124 = vmatpush1.msra.mxu0 0.0
    %125 = vmatprep.subr.mxu0 0.0
    %126 = vmatpush1.msra.mxu0 0.0
    %127 = vmatprep.subr.mxu0 0.0
    %128 = vmatpush1.msra.mxu0 0.0
    %129 = vmatprep.subr.mxu0 0.0
    %130 = vmatpush1.msra.mxu0 0.0
    %131 = vmatprep.subr.mxu0 0.0
    %132 = vmatpush1.msra.mxu0 0.0
    %133 = vmatprep.subr.mxu0 0.0
    %134 = vmatpush1.msra.mxu0 0.0
    %135 = vmatprep.subr.mxu0 0.0
    %136 = vmatpush1.msra.mxu0 0.0
    %137 = vmatprep.mubr.f32.mxu0 0.0
    %138 = vmatmul.mubr.f32.gmra.mrb[0].mxu0 %v71
    %v139 = vpop.f32.mrb[0].mxu0
    %v140 = vadd.f32 0.0, %v139
    %v141 = vpop.f32.mrb[0].mxu0
    %142 = vdwg.mxu0
    %v143 = vadd.f32 %v68, %v140
    %v144 = vtanh.pop %v143
    %v145 = vxor.u32 %v143, 2147483648
    %v146 = vmul.f32 %v145, 1.442695
    %v147 = vpow.pop %v146
    %v148 = vadd.f32 %v147, 1.0
    %v149 = vrcp.pop %v148
    %v150 = vmul.f32 1.0, %v149
    %v151 = vsel %vm67, %v144, %v150
    %v152 = vmul.f32 %v151, 0.0
    %154 = vrot.lane.b32.xlu0 %v151, 64
    %v155 = vpop.permute.xlu0 %154
    %v157 = vmul.f32 %v151, %v155
    %159 = vrot.lane.b32.xlu0 %v157, 32
    %v160 = vpop.permute.xlu0 %159
    %v162 = vadd.f32 %v152, %v160
    %v163 = vtanh.pop %v162
    %165 = vrot.lane.b32.xlu0 %v163, 64
    %v166 = vpop.permute.xlu0 %165
    %v168 = vmul.f32 %v151, %v166
    %s169 = scalar_lea.vmem [#allocation2], 8
    %v170 = vld [vmem:[%s169] sm:$0xff]
    %172 = vrot.lane.b32.xlu0 %v168, 32
    %v173 = vpop.permute.xlu0 %172
    %v174 = vsel %vm69, %v173, 0
    %176 = vmatprep.subr.mxu0 0.0
    %177 = vmatpush1.msra.mxu0 %v59
    %178 = vmatprep.subr.mxu0 0.0
    %179 = vmatpush1.msra.mxu0 %v60
    %180 = vmatprep.subr.mxu0 0.0
    %181 = vmatpush1.msra.mxu0 %v61
    %182 = vmatprep.subr.mxu0 0.0
    %183 = vmatpush1.msra.mxu0 %v62
    %184 = vmatprep.subr.mxu0 0.0
    %185 = vmatpush1.msra.mxu0 0.0
    %186 = vmatprep.subr.mxu0 0.0
    %187 = vmatpush1.msra.mxu0 0.0
    %188 = vmatprep.subr.mxu0 0.0
    %189 = vmatpush1.msra.mxu0 0.0
    %190 = vmatprep.subr.mxu0 0.0
    %191 = vmatpush1.msra.mxu0 0.0
    %192 = vmatprep.subr.mxu0 0.0
    %193 = vmatpush1.msra.mxu0 0.0
    %194 = vmatprep.subr.mxu0 0.0
    %195 = vmatpush1.msra.mxu0 0.0
    %196 = vmatprep.subr.mxu0 0.0
    %197 = vmatpush1.msra.mxu0 0.0
    %198 = vmatprep.subr.mxu0 0.0
    %199 = vmatpush1.msra.mxu0 0.0
    %200 = vmatprep.subr.mxu0 0.0
    %201 = vmatpush1.msra.mxu0 0.0
    %202 = vmatprep.subr.mxu0 0.0
    %203 = vmatpush1.msra.mxu0 0.0
    %204 = vmatprep.subr.mxu0 0.0
    %205 = vmatpush1.msra.mxu0 0.0
    %206 = vmatprep.subr.mxu0 0.0
    %207 = vmatpush1.msra.mxu0 0.0
    %208 = vmatprep.subr.mxu0 0.0
    %209 = vmatpush1.msra.mxu0 0.0
    %210 = vmatprep.subr.mxu0 0.0
    %211 = vmatpush1.msra.mxu0 0.0
    %212 = vmatprep.subr.mxu0 0.0
    %213 = vmatpush1.msra.mxu0 0.0
    %214 = vmatprep.subr.mxu0 0.0
    %215 = vmatpush1.msra.mxu0 0.0
    %216 = vmatprep.subr.mxu0 0.0
    %217 = vmatpush1.msra.mxu0 0.0
    %218 = vmatprep.subr.mxu0 0.0
    %219 = vmatpush1.msra.mxu0 0.0
    %220 = vmatprep.subr.mxu0 0.0
    %221 = vmatpush1.msra.mxu0 0.0
    %222 = vmatprep.subr.mxu0 0.0
    %223 = vmatpush1.msra.mxu0 0.0
    %224 = vmatprep.subr.mxu0 0.0
    %225 = vmatpush1.msra.mxu0 0.0
    %226 = vmatprep.subr.mxu0 0.0
    %227 = vmatpush1.msra.mxu0 0.0
    %228 = vmatprep.subr.mxu0 0.0
    %229 = vmatpush1.msra.mxu0 0.0
    %230 = vmatprep.subr.mxu0 0.0
    %231 = vmatpush1.msra.mxu0 0.0
    %232 = vmatprep.subr.mxu0 0.0
    %233 = vmatpush1.msra.mxu0 0.0
    %234 = vmatprep.subr.mxu0 0.0
    %235 = vmatpush1.msra.mxu0 0.0
    %236 = vmatprep.subr.mxu0 0.0
    %237 = vmatpush1.msra.mxu0 0.0
    %238 = vmatprep.subr.mxu0 0.0
    %239 = vmatpush1.msra.mxu0 0.0
    %240 = vmatprep.mubr.f32.mxu0 0.0
    %241 = vmatmul.mubr.f32.gmra.mrb[0].mxu0 %v174
    %v242 = vpop.f32.mrb[0].mxu0
    %v243 = vadd.f32 0.0, %v242
    %v244 = vpop.f32.mrb[0].mxu0
    %245 = vdwg.mxu0
    %v246 = vadd.f32 %v170, %v243
    %v247 = vtanh.pop %v246
    %v248 = vxor.u32 %v246, 2147483648
    %v249 = vmul.f32 %v248, 1.442695
    %v250 = vpow.pop %v249
    %v251 = vadd.f32 %v250, 1.0
    %v252 = vrcp.pop %v251
    %v253 = vmul.f32 1.0, %v252
    %v254 = vsel %vm67, %v247, %v253
    %v255 = vmul.f32 %v254, %v162
    %257 = vrot.lane.b32.xlu0 %v254, 64
    %v258 = vpop.permute.xlu0 %257
    %v260 = vmul.f32 %v254, %v258
    %262 = vrot.lane.b32.xlu0 %v260, 32
    %v263 = vpop.permute.xlu0 %262
    %v265 = vadd.f32 %v255, %v263
    %v266 = vtanh.pop %v265
    %268 = vrot.lane.b32.xlu0 %v266, 64
    %v269 = vpop.permute.xlu0 %268
    %v271 = vmul.f32 %v254, %v269
    %s272 = scalar_lea.vmem [#allocation2], 16
    %v273 = vld [vmem:[%s272] sm:$0xff]
    %275 = vrot.lane.b32.xlu0 %v271, 32
    %v276 = vpop.permute.xlu0 %275
    %v277 = vsel %vm69, %v276, 0
    %279 = vmatprep.subr.mxu0 0.0
    %280 = vmatpush1.msra.mxu0 %v59
    %281 = vmatprep.subr.mxu0 0.0
    %282 = vmatpush1.msra.mxu0 %v60
    %283 = vmatprep.subr.mxu0 0.0
    %284 = vmatpush1.msra.mxu0 %v61
    %285 = vmatprep.subr.mxu0 0.0
    %286 = vmatpush1.msra.mxu0 %v62
    %287 = vmatprep.subr.mxu0 0.0
    %288 = vmatpush1.msra.mxu0 0.0
    %289 = vmatprep.subr.mxu0 0.0
    %290 = vmatpush1.msra.mxu0 0.0
    %291 = vmatprep.subr.mxu0 0.0
    %292 = vmatpush1.msra.mxu0 0.0
    %293 = vmatprep.subr.mxu0 0.0
    %294 = vmatpush1.msra.mxu0 0.0
    %295 = vmatprep.subr.mxu0 0.0
    %296 = vmatpush1.msra.mxu0 0.0
    %297 = vmatprep.subr.mxu0 0.0
    %298 = vmatpush1.msra.mxu0 0.0
    %299 = vmatprep.subr.mxu0 0.0
    %300 = vmatpush1.msra.mxu0 0.0
    %301 = vmatprep.subr.mxu0 0.0
    %302 = vmatpush1.msra.mxu0 0.0
    %303 = vmatprep.subr.mxu0 0.0
    %304 = vmatpush1.msra.mxu0 0.0
    %305 = vmatprep.subr.mxu0 0.0
    %306 = vmatpush1.msra.mxu0 0.0
    %307 = vmatprep.subr.mxu0 0.0
    %308 = vmatpush1.msra.mxu0 0.0
    %309 = vmatprep.subr.mxu0 0.0
    %310 = vmatpush1.msra.mxu0 0.0
    %311 = vmatprep.subr.mxu0 0.0
    %312 = vmatpush1.msra.mxu0 0.0
    %313 = vmatprep.subr.mxu0 0.0
    %314 = vmatpush1.msra.mxu0 0.0
    %315 = vmatprep.subr.mxu0 0.0
    %316 = vmatpush1.msra.mxu0 0.0
    %317 = vmatprep.subr.mxu0 0.0
    %318 = vmatpush1.msra.mxu0 0.0
    %319 = vmatprep.subr.mxu0 0.0
    %320 = vmatpush1.msra.mxu0 0.0
    %321 = vmatprep.subr.mxu0 0.0
    %322 = vmatpush1.msra.mxu0 0.0
    %323 = vmatprep.subr.mxu0 0.0
    %324 = vmatpush1.msra.mxu0 0.0
    %325 = vmatprep.subr.mxu0 0.0
    %326 = vmatpush1.msra.mxu0 0.0
    %327 = vmatprep.subr.mxu0 0.0
    %328 = vmatpush1.msra.mxu0 0.0
    %329 = vmatprep.subr.mxu0 0.0
    %330 = vmatpush1.msra.mxu0 0.0
    %331 = vmatprep.subr.mxu0 0.0
    %332 = vmatpush1.msra.mxu0 0.0
    %333 = vmatprep.subr.mxu0 0.0
    %334 = vmatpush1.msra.mxu0 0.0
    %335 = vmatprep.subr.mxu0 0.0
    %336 = vmatpush1.msra.mxu0 0.0
    %337 = vmatprep.subr.mxu0 0.0
    %338 = vmatpush1.msra.mxu0 0.0
    %339 = vmatprep.subr.mxu0 0.0
    %340 = vmatpush1.msra.mxu0 0.0
    %341 = vmatprep.subr.mxu0 0.0
    %342 = vmatpush1.msra.mxu0 0.0
    %343 = vmatprep.mubr.f32.mxu0 0.0
    %344 = vmatmul.mubr.f32.gmra.mrb[0].mxu0 %v277
    %v345 = vpop.f32.mrb[0].mxu0
    %v346 = vadd.f32 0.0, %v345
    %v347 = vpop.f32.mrb[0].mxu0
    %348 = vdwg.mxu0
    %v349 = vadd.f32 %v273, %v346
    %v350 = vtanh.pop %v349
    %v351 = vxor.u32 %v349, 2147483648
    %v352 = vmul.f32 %v351, 1.442695
    %v353 = vpow.pop %v352
    %v354 = vadd.f32 %v353, 1.0
    %v355 = vrcp.pop %v354
    %v356 = vmul.f32 1.0, %v355
    %v357 = vsel %vm67, %v350, %v356
    %v358 = vmul.f32 %v357, %v265
    %360 = vrot.lane.b32.xlu0 %v357, 64
    %v361 = vpop.permute.xlu0 %360
    %v363 = vmul.f32 %v357, %v361
    %365 = vrot.lane.b32.xlu0 %v363, 32
    %v366 = vpop.permute.xlu0 %365
    %v368 = vadd.f32 %v358, %v366
    %v369 = vtanh.pop %v368
    %371 = vrot.lane.b32.xlu0 %v369, 64
    %v372 = vpop.permute.xlu0 %371
    %v374 = vmul.f32 %v357, %v372
    %s375 = scalar_lea.vmem [#allocation2], 24
    %v376 = vld [vmem:[%s375] sm:$0xff]
    %378 = vrot.lane.b32.xlu0 %v374, 32
    %v379 = vpop.permute.xlu0 %378
    %v380 = vsel %vm69, %v379, 0
    %382 = vmatprep.subr.mxu0 0.0
    %383 = vmatpush1.msra.mxu0 %v59
    %384 = vmatprep.subr.mxu0 0.0
    %385 = vmatpush1.msra.mxu0 %v60
    %386 = vmatprep.subr.mxu0 0.0
    %387 = vmatpush1.msra.mxu0 %v61
    %388 = vmatprep.subr.mxu0 0.0
    %389 = vmatpush1.msra.mxu0 %v62
    %390 = vmatprep.subr.mxu0 0.0
    %391 = vmatpush1.msra.mxu0 0.0
    %392 = vmatprep.subr.mxu0 0.0
    %393 = vmatpush1.msra.mxu0 0.0
    %394 = vmatprep.subr.mxu0 0.0
    %395 = vmatpush1.msra.mxu0 0.0
    %396 = vmatprep.subr.mxu0 0.0
    %397 = vmatpush1.msra.mxu0 0.0
    %398 = vmatprep.subr.mxu0 0.0
    %399 = vmatpush1.msra.mxu0 0.0
    %400 = vmatprep.subr.mxu0 0.0
    %401 = vmatpush1.msra.mxu0 0.0
    %402 = vmatprep.subr.mxu0 0.0
    %403 = vmatpush1.msra.mxu0 0.0
    %404 = vmatprep.subr.mxu0 0.0
    %405 = vmatpush1.msra.mxu0 0.0
    %406 = vmatprep.subr.mxu0 0.0
    %407 = vmatpush1.msra.mxu0 0.0
    %408 = vmatprep.subr.mxu0 0.0
    %409 = vmatpush1.msra.mxu0 0.0
    %410 = vmatprep.subr.mxu0 0.0
    %411 = vmatpush1.msra.mxu0 0.0
    %412 = vmatprep.subr.mxu0 0.0
    %413 = vmatpush1.msra.mxu0 0.0
    %414 = vmatprep.subr.mxu0 0.0
    %415 = vmatpush1.msra.mxu0 0.0
    %416 = vmatprep.subr.mxu0 0.0
    %417 = vmatpush1.msra.mxu0 0.0
    %418 = vmatprep.subr.mxu0 0.0
    %419 = vmatpush1.msra.mxu0 0.0
    %420 = vmatprep.subr.mxu0 0.0
    %421 = vmatpush1.msra.mxu0 0.0
    %422 = vmatprep.subr.mxu0 0.0
    %423 = vmatpush1.msra.mxu0 0.0
    %424 = vmatprep.subr.mxu0 0.0
    %425 = vmatpush1.msra.mxu0 0.0
    %426 = vmatprep.subr.mxu0 0.0
    %427 = vmatpush1.msra.mxu0 0.0
    %428 = vmatprep.subr.mxu0 0.0
    %429 = vmatpush1.msra.mxu0 0.0
    %430 = vmatprep.subr.mxu0 0.0
    %431 = vmatpush1.msra.mxu0 0.0
    %432 = vmatprep.subr.mxu0 0.0
    %433 = vmatpush1.msra.mxu0 0.0
    %434 = vmatprep.subr.mxu0 0.0
    %435 = vmatpush1.msra.mxu0 0.0
    %436 = vmatprep.subr.mxu0 0.0
    %437 = vmatpush1.msra.mxu0 0.0
    %438 = vmatprep.subr.mxu0 0.0
    %439 = vmatpush1.msra.mxu0 0.0
    %440 = vmatprep.subr.mxu0 0.0
    %441 = vmatpush1.msra.mxu0 0.0
    %442 = vmatprep.subr.mxu0 0.0
    %443 = vmatpush1.msra.mxu0 0.0
    %444 = vmatprep.subr.mxu0 0.0
    %445 = vmatpush1.msra.mxu0 0.0
    %446 = vmatprep.mubr.f32.mxu0 0.0
    %447 = vmatmul.mubr.f32.gmra.mrb[0].mxu0 %v380
    %v448 = vpop.f32.mrb[0].mxu0
    %v449 = vadd.f32 0.0, %v448
    %v450 = vpop.f32.mrb[0].mxu0
    %451 = vdwg.mxu0
    %v452 = vadd.f32 %v376, %v449
    %v453 = vtanh.pop %v452
    %v454 = vxor.u32 %v452, 2147483648
    %v455 = vmul.f32 %v454, 1.442695
    %v456 = vpow.pop %v455
    %v457 = vadd.f32 %v456, 1.0
    %v458 = vrcp.pop %v457
    %v459 = vmul.f32 1.0, %v458
    %v460 = vsel %vm67, %v453, %v459
    %v461 = vmul.f32 %v460, %v368
    %463 = vrot.lane.b32.xlu0 %v460, 64
    %v464 = vpop.permute.xlu0 %463
    %v466 = vmul.f32 %v460, %v464
    %468 = vrot.lane.b32.xlu0 %v466, 32
    %v469 = vpop.permute.xlu0 %468
    %v471 = vadd.f32 %v461, %v469
    %v472 = vtanh.pop %v471
    %474 = vrot.lane.b32.xlu0 %v472, 64
    %v475 = vpop.permute.xlu0 %474
    %v477 = vmul.f32 %v460, %v475
    %s478 = scalar_lea.vmem [#allocation2], 32
    %v479 = vld [vmem:[%s478] sm:$0xff]
    %481 = vrot.lane.b32.xlu0 %v477, 32
    %v482 = vpop.permute.xlu0 %481
    %v483 = vsel %vm69, %v482, 0
    %485 = vmatprep.subr.mxu0 0.0
    %486 = vmatpush1.msra.mxu0 %v59
    %487 = vmatprep.subr.mxu0 0.0
    %488 = vmatpush1.msra.mxu0 %v60
    %489 = vmatprep.subr.mxu0 0.0
    %490 = vmatpush1.msra.mxu0 %v61
    %491 = vmatprep.subr.mxu0 0.0
    %492 = vmatpush1.msra.mxu0 %v62
    %493 = vmatprep.subr.mxu0 0.0
    %494 = vmatpush1.msra.mxu0 0.0
    %495 = vmatprep.subr.mxu0 0.0
    %496 = vmatpush1.msra.mxu0 0.0
    %497 = vmatprep.subr.mxu0 0.0
    %498 = vmatpush1.msra.mxu0 0.0
    %499 = vmatprep.subr.mxu0 0.0
    %500 = vmatpush1.msra.mxu0 0.0
    %501 = vmatprep.subr.mxu0 0.0
    %502 = vmatpush1.msra.mxu0 0.0
    %503 = vmatprep.subr.mxu0 0.0
    %504 = vmatpush1.msra.mxu0 0.0
    %505 = vmatprep.subr.mxu0 0.0
    %506 = vmatpush1.msra.mxu0 0.0
    %507 = vmatprep.subr.mxu0 0.0
    %508 = vmatpush1.msra.mxu0 0.0
    %509 = vmatprep.subr.mxu0 0.0
    %510 = vmatpush1.msra.mxu0 0.0
    %511 = vmatprep.subr.mxu0 0.0
    %512 = vmatpush1.msra.mxu0 0.0
    %513 = vmatprep.subr.mxu0 0.0
    %514 = vmatpush1.msra.mxu0 0.0
    %515 = vmatprep.subr.mxu0 0.0
    %516 = vmatpush1.msra.mxu0 0.0
    %517 = vmatprep.subr.mxu0 0.0
    %518 = vmatpush1.msra.mxu0 0.0
    %519 = vmatprep.subr.mxu0 0.0
    %520 = vmatpush1.msra.mxu0 0.0
    %521 = vmatprep.subr.mxu0 0.0
    %522 = vmatpush1.msra.mxu0 0.0
    %523 = vmatprep.subr.mxu0 0.0
    %524 = vmatpush1.msra.mxu0 0.0
    %525 = vmatprep.subr.mxu0 0.0
    %526 = vmatpush1.msra.mxu0 0.0
    %527 = vmatprep.subr.mxu0 0.0
    %528 = vmatpush1.msra.mxu0 0.0
    %529 = vmatprep.subr.mxu0 0.0
    %530 = vmatpush1.msra.mxu0 0.0
    %531 = vmatprep.subr.mxu0 0.0
    %532 = vmatpush1.msra.mxu0 0.0
    %533 = vmatprep.subr.mxu0 0.0
    %534 = vmatpush1.msra.mxu0 0.0
    %535 = vmatprep.subr.mxu0 0.0
    %536 = vmatpush1.msra.mxu0 0.0
    %537 = vmatprep.subr.mxu0 0.0
    %538 = vmatpush1.msra.mxu0 0.0
    %539 = vmatprep.subr.mxu0 0.0
    %540 = vmatpush1.msra.mxu0 0.0
    %541 = vmatprep.subr.mxu0 0.0
    %542 = vmatpush1.msra.mxu0 0.0
    %543 = vmatprep.subr.mxu0 0.0
    %544 = vmatpush1.msra.mxu0 0.0
    %545 = vmatprep.subr.mxu0 0.0
    %546 = vmatpush1.msra.mxu0 0.0
    %547 = vmatprep.subr.mxu0 0.0
    %548 = vmatpush1.msra.mxu0 0.0
    %549 = vmatprep.mubr.f32.mxu0 0.0
    %550 = vmatmul.mubr.f32.gmra.mrb[0].mxu0 %v483
    %v551 = vpop.f32.mrb[0].mxu0
    %v552 = vadd.f32 0.0, %v551
    %v553 = vpop.f32.mrb[0].mxu0
    %554 = vdwg.mxu0
    %v555 = vadd.f32 %v479, %v552
    %v556 = vtanh.pop %v555
    %v557 = vxor.u32 %v555, 2147483648
    %v558 = vmul.f32 %v557, 1.442695
    %v559 = vpow.pop %v558
    %v560 = vadd.f32 %v559, 1.0
    %v561 = vrcp.pop %v560
    %v562 = vmul.f32 1.0, %v561
    %v563 = vsel %vm67, %v556, %v562
    %v564 = vmul.f32 %v563, %v471
    %566 = vrot.lane.b32.xlu0 %v563, 64
    %v567 = vpop.permute.xlu0 %566
    %v569 = vmul.f32 %v563, %v567
    %571 = vrot.lane.b32.xlu0 %v569, 32
    %v572 = vpop.permute.xlu0 %571
    %v574 = vadd.f32 %v564, %v572
    %v575 = vtanh.pop %v574
    %577 = vrot.lane.b32.xlu0 %v575, 64
    %v578 = vpop.permute.xlu0 %577
    %v580 = vmul.f32 %v563, %v578
    %s581 = scalar_lea.vmem [#allocation2], 40
    %v582 = vld [vmem:[%s581] sm:$0xff]
    %584 = vrot.lane.b32.xlu0 %v580, 32
    %v585 = vpop.permute.xlu0 %584
    %v586 = vsel %vm69, %v585, 0
    %588 = vmatprep.subr.mxu0 0.0
    %589 = vmatpush1.msra.mxu0 %v59
    %590 = vmatprep.subr.mxu0 0.0
    %591 = vmatpush1.msra.mxu0 %v60
    %592 = vmatprep.subr.mxu0 0.0
    %593 = vmatpush1.msra.mxu0 %v61
    %594 = vmatprep.subr.mxu0 0.0
    %595 = vmatpush1.msra.mxu0 %v62
    %596 = vmatprep.subr.mxu0 0.0
    %597 = vmatpush1.msra.mxu0 0.0
    %598 = vmatprep.subr.mxu0 0.0
    %599 = vmatpush1.msra.mxu0 0.0
    %600 = vmatprep.subr.mxu0 0.0
    %601 = vmatpush1.msra.mxu0 0.0
    %602 = vmatprep.subr.mxu0 0.0
    %603 = vmatpush1.msra.mxu0 0.0
    %604 = vmatprep.subr.mxu0 0.0
    %605 = vmatpush1.msra.mxu0 0.0
    %606 = vmatprep.subr.mxu0 0.0
    %607 = vmatpush1.msra.mxu0 0.0
    %608 = vmatprep.subr.mxu0 0.0
    %609 = vmatpush1.msra.mxu0 0.0
    %610 = vmatprep.subr.mxu0 0.0
    %611 = vmatpush1.msra.mxu0 0.0
    %612 = vmatprep.subr.mxu0 0.0
    %613 = vmatpush1.msra.mxu0 0.0
    %614 = vmatprep.subr.mxu0 0.0
    %615 = vmatpush1.msra.mxu0 0.0
    %616 = vmatprep.subr.mxu0 0.0
    %617 = vmatpush1.msra.mxu0 0.0
    %618 = vmatprep.subr.mxu0 0.0
    %619 = vmatpush1.msra.mxu0 0.0
    %620 = vmatprep.subr.mxu0 0.0
    %621 = vmatpush1.msra.mxu0 0.0
    %622 = vmatprep.subr.mxu0 0.0
    %623 = vmatpush1.msra.mxu0 0.0
    %624 = vmatprep.subr.mxu0 0.0
    %625 = vmatpush1.msra.mxu0 0.0
    %626 = vmatprep.subr.mxu0 0.0
    %627 = vmatpush1.msra.mxu0 0.0
    %628 = vmatprep.subr.mxu0 0.0
    %629 = vmatpush1.msra.mxu0 0.0
    %630 = vmatprep.subr.mxu0 0.0
    %631 = vmatpush1.msra.mxu0 0.0
    %632 = vmatprep.subr.mxu0 0.0
    %633 = vmatpush1.msra.mxu0 0.0
    %634 = vmatprep.subr.mxu0 0.0
    %635 = vmatpush1.msra.mxu0 0.0
    %636 = vmatprep.subr.mxu0 0.0
    %637 = vmatpush1.msra.mxu0 0.0
    %638 = vmatprep.subr.mxu0 0.0
    %639 = vmatpush1.msra.mxu0 0.0
    %640 = vmatprep.subr.mxu0 0.0
    %641 = vmatpush1.msra.mxu0 0.0
    %642 = vmatprep.subr.mxu0 0.0
    %643 = vmatpush1.msra.mxu0 0.0
    %644 = vmatprep.subr.mxu0 0.0
    %645 = vmatpush1.msra.mxu0 0.0
    %646 = vmatprep.subr.mxu0 0.0
    %647 = vmatpush1.msra.mxu0 0.0
    %648 = vmatprep.subr.mxu0 0.0
    %649 = vmatpush1.msra.mxu0 0.0
    %650 = vmatprep.subr.mxu0 0.0
    %651 = vmatpush1.msra.mxu0 0.0
    %652 = vmatprep.mubr.f32.mxu0 0.0
    %653 = vmatmul.mubr.f32.gmra.mrb[0].mxu0 %v586
    %v654 = vpop.f32.mrb[0].mxu0
    %v655 = vadd.f32 0.0, %v654
    %v656 = vpop.f32.mrb[0].mxu0
    %657 = vdwg.mxu0
    %v658 = vadd.f32 %v582, %v655
    %v659 = vtanh.pop %v658
    %v660 = vxor.u32 %v658, 2147483648
    %v661 = vmul.f32 %v660, 1.442695
    %v662 = vpow.pop %v661
    %v663 = vadd.f32 %v662, 1.0
    %v664 = vrcp.pop %v663
    %v665 = vmul.f32 1.0, %v664
    %v666 = vsel %vm67, %v659, %v665
    %v667 = vmul.f32 %v666, %v574
    %669 = vrot.lane.b32.xlu0 %v666, 64
    %v670 = vpop.permute.xlu0 %669
    %v672 = vmul.f32 %v666, %v670
    %674 = vrot.lane.b32.xlu0 %v672, 32
    %v675 = vpop.permute.xlu0 %674
    %v677 = vadd.f32 %v667, %v675
    %v678 = vtanh.pop %v677
    %680 = vrot.lane.b32.xlu0 %v678, 64
    %v681 = vpop.permute.xlu0 %680
    %v683 = vmul.f32 %v666, %v681
    %s684 = scalar_lea.vmem [#allocation2], 48
    %v685 = vld [vmem:[%s684] sm:$0xff]
    %687 = vrot.lane.b32.xlu0 %v683, 32
    %v688 = vpop.permute.xlu0 %687
    %v689 = vsel %vm69, %v688, 0
    %691 = vmatprep.subr.mxu0 0.0
    %692 = vmatpush1.msra.mxu0 %v59
    %693 = vmatprep.subr.mxu0 0.0
    %694 = vmatpush1.msra.mxu0 %v60
    %695 = vmatprep.subr.mxu0 0.0
    %696 = vmatpush1.msra.mxu0 %v61
    %697 = vmatprep.subr.mxu0 0.0
    %698 = vmatpush1.msra.mxu0 %v62
    %699 = vmatprep.subr.mxu0 0.0
    %700 = vmatpush1.msra.mxu0 0.0
    %701 = vmatprep.subr.mxu0 0.0
    %702 = vmatpush1.msra.mxu0 0.0
    %703 = vmatprep.subr.mxu0 0.0
    %704 = vmatpush1.msra.mxu0 0.0
    %705 = vmatprep.subr.mxu0 0.0
    %706 = vmatpush1.msra.mxu0 0.0
    %707 = vmatprep.subr.mxu0 0.0
    %708 = vmatpush1.msra.mxu0 0.0
    %709 = vmatprep.subr.mxu0 0.0
    %710 = vmatpush1.msra.mxu0 0.0
    %711 = vmatprep.subr.mxu0 0.0
    %712 = vmatpush1.msra.mxu0 0.0
    %713 = vmatprep.subr.mxu0 0.0
    %714 = vmatpush1.msra.mxu0 0.0
    %715 = vmatprep.subr.mxu0 0.0
    %716 = vmatpush1.msra.mxu0 0.0
    %717 = vmatprep.subr.mxu0 0.0
    %718 = vmatpush1.msra.mxu0 0.0
    %719 = vmatprep.subr.mxu0 0.0
    %720 = vmatpush1.msra.mxu0 0.0
    %721 = vmatprep.subr.mxu0 0.0
    %722 = vmatpush1.msra.mxu0 0.0
    %723 = vmatprep.subr.mxu0 0.0
    %724 = vmatpush1.msra.mxu0 0.0
    %725 = vmatprep.subr.mxu0 0.0
    %726 = vmatpush1.msra.mxu0 0.0
    %727 = vmatprep.subr.mxu0 0.0
    %728 = vmatpush1.msra.mxu0 0.0
    %729 = vmatprep.subr.mxu0 0.0
    %730 = vmatpush1.msra.mxu0 0.0
    %731 = vmatprep.subr.mxu0 0.0
    %732 = vmatpush1.msra.mxu0 0.0
    %733 = vmatprep.subr.mxu0 0.0
    %734 = vmatpush1.msra.mxu0 0.0
    %735 = vmatprep.subr.mxu0 0.0
    %736 = vmatpush1.msra.mxu0 0.0
    %737 = vmatprep.subr.mxu0 0.0
    %738 = vmatpush1.msra.mxu0 0.0
    %739 = vmatprep.subr.mxu0 0.0
    %740 = vmatpush1.msra.mxu0 0.0
    %741 = vmatprep.subr.mxu0 0.0
    %742 = vmatpush1.msra.mxu0 0.0
    %743 = vmatprep.subr.mxu0 0.0
    %744 = vmatpush1.msra.mxu0 0.0
    %745 = vmatprep.subr.mxu0 0.0
    %746 = vmatpush1.msra.mxu0 0.0
    %747 = vmatprep.subr.mxu0 0.0
    %748 = vmatpush1.msra.mxu0 0.0
    %749 = vmatprep.subr.mxu0 0.0
    %750 = vmatpush1.msra.mxu0 0.0
    %751 = vmatprep.subr.mxu0 0.0
    %752 = vmatpush1.msra.mxu0 0.0
    %753 = vmatprep.subr.mxu0 0.0
    %754 = vmatpush1.msra.mxu0 0.0
    %755 = vmatprep.mubr.f32.mxu0 0.0
    %756 = vmatmul.mubr.f32.gmra.mrb[0].mxu0 %v689
    %v757 = vpop.f32.mrb[0].mxu0
    %v758 = vadd.f32 0.0, %v757
    %v759 = vpop.f32.mrb[0].mxu0
    %760 = vdwg.mxu0
    %v761 = vadd.f32 %v685, %v758
    %v762 = vtanh.pop %v761
    %v763 = vxor.u32 %v761, 2147483648
    %v764 = vmul.f32 %v763, 1.442695
    %v765 = vpow.pop %v764
    %v766 = vadd.f32 %v765, 1.0
    %v767 = vrcp.pop %v766
    %v768 = vmul.f32 1.0, %v767
    %v769 = vsel %vm67, %v762, %v768
    %v770 = vmul.f32 %v769, %v677
    %772 = vrot.lane.b32.xlu0 %v769, 64
    %v773 = vpop.permute.xlu0 %772
    %v775 = vmul.f32 %v769, %v773
    %777 = vrot.lane.b32.xlu0 %v775, 32
    %v778 = vpop.permute.xlu0 %777
    %v780 = vadd.f32 %v770, %v778
    %v781 = vtanh.pop %v780
    %783 = vrot.lane.b32.xlu0 %v781, 64
    %v784 = vpop.permute.xlu0 %783
    %v786 = vmul.f32 %v769, %v784
    %s787 = scalar_lea.vmem [#allocation2], 56
    %v788 = vld [vmem:[%s787] sm:$0xff]
    %790 = vrot.lane.b32.xlu0 %v786, 32
    %v791 = vpop.permute.xlu0 %790
    %v792 = vsel %vm69, %v791, 0
    %794 = vmatprep.subr.mxu0 0.0
    %795 = vmatpush1.msra.mxu0 %v59
    %796 = vmatprep.subr.mxu0 0.0
    %797 = vmatpush1.msra.mxu0 %v60
    %798 = vmatprep.subr.mxu0 0.0
    %799 = vmatpush1.msra.mxu0 %v61
    %800 = vmatprep.subr.mxu0 0.0
    %801 = vmatpush1.msra.mxu0 %v62
    %802 = vmatprep.subr.mxu0 0.0
    %803 = vmatpush1.msra.mxu0 0.0
    %804 = vmatprep.subr.mxu0 0.0
    %805 = vmatpush1.msra.mxu0 0.0
    %806 = vmatprep.subr.mxu0 0.0
    %807 = vmatpush1.msra.mxu0 0.0
    %808 = vmatprep.subr.mxu0 0.0
    %809 = vmatpush1.msra.mxu0 0.0
    %810 = vmatprep.subr.mxu0 0.0
    %811 = vmatpush1.msra.mxu0 0.0
    %812 = vmatprep.subr.mxu0 0.0
    %813 = vmatpush1.msra.mxu0 0.0
    %814 = vmatprep.subr.mxu0 0.0
    %815 = vmatpush1.msra.mxu0 0.0
    %816 = vmatprep.subr.mxu0 0.0
    %817 = vmatpush1.msra.mxu0 0.0
    %818 = vmatprep.subr.mxu0 0.0
    %819 = vmatpush1.msra.mxu0 0.0
    %820 = vmatprep.subr.mxu0 0.0
    %821 = vmatpush1.msra.mxu0 0.0
    %822 = vmatprep.subr.mxu0 0.0
    %823 = vmatpush1.msra.mxu0 0.0
    %824 = vmatprep.subr.mxu0 0.0
    %825 = vmatpush1.msra.mxu0 0.0
    %826 = vmatprep.subr.mxu0 0.0
    %827 = vmatpush1.msra.mxu0 0.0
    %828 = vmatprep.subr.mxu0 0.0
    %829 = vmatpush1.msra.mxu0 0.0
    %830 = vmatprep.subr.mxu0 0.0
    %831 = vmatpush1.msra.mxu0 0.0
    %832 = vmatprep.subr.mxu0 0.0
    %833 = vmatpush1.msra.mxu0 0.0
    %834 = vmatprep.subr.mxu0 0.0
    %835 = vmatpush1.msra.mxu0 0.0
    %836 = vmatprep.subr.mxu0 0.0
    %837 = vmatpush1.msra.mxu0 0.0
    %838 = vmatprep.subr.mxu0 0.0
    %839 = vmatpush1.msra.mxu0 0.0
    %840 = vmatprep.subr.mxu0 0.0
    %841 = vmatpush1.msra.mxu0 0.0
    %842 = vmatprep.subr.mxu0 0.0
    %843 = vmatpush1.msra.mxu0 0.0
    %844 = vmatprep.subr.mxu0 0.0
    %845 = vmatpush1.msra.mxu0 0.0
    %846 = vmatprep.subr.mxu0 0.0
    %847 = vmatpush1.msra.mxu0 0.0
    %848 = vmatprep.subr.mxu0 0.0
    %849 = vmatpush1.msra.mxu0 0.0
    %850 = vmatprep.subr.mxu0 0.0
    %851 = vmatpush1.msra.mxu0 0.0
    %852 = vmatprep.subr.mxu0 0.0
    %853 = vmatpush1.msra.mxu0 0.0
    %854 = vmatprep.subr.mxu0 0.0
    %855 = vmatpush1.msra.mxu0 0.0
    %856 = vmatprep.subr.mxu0 0.0
    %857 = vmatpush1.msra.mxu0 0.0
    %858 = vmatprep.mubr.f32.mxu0 0.0
    %859 = vmatmul.mubr.f32.gmra.mrb[0].mxu0 %v792
    %v860 = vpop.f32.mrb[0].mxu0
    %v861 = vadd.f32 0.0, %v860
    %v862 = vpop.f32.mrb[0].mxu0
    %863 = vdwg.mxu0
    %v864 = vadd.f32 %v788, %v861
    %v865 = vtanh.pop %v864
    %v866 = vxor.u32 %v864, 2147483648
    %v867 = vmul.f32 %v866, 1.442695
    %v868 = vpow.pop %v867
    %v869 = vadd.f32 %v868, 1.0
    %v870 = vrcp.pop %v869
    %v871 = vmul.f32 1.0, %v870
    %v872 = vsel %vm67, %v865, %v871
    %v873 = vmul.f32 %v872, %v780
    %875 = vrot.lane.b32.xlu0 %v872, 64
    %v876 = vpop.permute.xlu0 %875
    %v878 = vmul.f32 %v872, %v876
    %880 = vrot.lane.b32.xlu0 %v878, 32
    %v881 = vpop.permute.xlu0 %880
    %v883 = vadd.f32 %v873, %v881
    %v884 = vtanh.pop %v883
    %886 = vrot.lane.b32.xlu0 %v884, 64
    %v887 = vpop.permute.xlu0 %886
    %v889 = vmul.f32 %v872, %v887
    %v890 = vld [vmem:[#allocation7] sm:$0xff]
    %v891 = vld [vmem:[#allocation7 + $0x8] sm:$0xff]
    %v892 = vld [vmem:[#allocation7 + $0x10] sm:$0xff]
    %v893 = vld [vmem:[#allocation7 + $0x18] sm:$0xff]
    %v894 = vld [vmem:[%s3] sm:$0x1]
    %v896 = vlaneseq
    %v897 = vshrl.u32 %v896, 7
    %v898 = vsub.s32 0, %v897
    %v899 = vrot.slane %v894, %v898
    %902 = vrot.lane.b32.xlu0 %v889, 32
    %v903 = vpop.permute.xlu0 %902
    %v904 = vsel %vm69, %v903, 0
    %906 = vmatprep.subr.mxu0 0.0
    %907 = vmatpush1.msra.mxu0 %v890
    %908 = vmatprep.subr.mxu0 0.0
    %909 = vmatpush1.msra.mxu0 %v891
    %910 = vmatprep.subr.mxu0 0.0
    %911 = vmatpush1.msra.mxu0 %v892
    %912 = vmatprep.subr.mxu0 0.0
    %913 = vmatpush1.msra.mxu0 %v893
    %914 = vmatprep.subr.mxu0 0.0
    %915 = vmatpush1.msra.mxu0 0.0
    %916 = vmatprep.subr.mxu0 0.0
    %917 = vmatpush1.msra.mxu0 0.0
    %918 = vmatprep.subr.mxu0 0.0
    %919 = vmatpush1.msra.mxu0 0.0
    %920 = vmatprep.subr.mxu0 0.0
    %921 = vmatpush1.msra.mxu0 0.0
    %922 = vmatprep.subr.mxu0 0.0
    %923 = vmatpush1.msra.mxu0 0.0
    %924 = vmatprep.subr.mxu0 0.0
    %925 = vmatpush1.msra.mxu0 0.0
    %926 = vmatprep.subr.mxu0 0.0
    %927 = vmatpush1.msra.mxu0 0.0
    %928 = vmatprep.subr.mxu0 0.0
    %929 = vmatpush1.msra.mxu0 0.0
    %930 = vmatprep.subr.mxu0 0.0
    %931 = vmatpush1.msra.mxu0 0.0
    %932 = vmatprep.subr.mxu0 0.0
    %933 = vmatpush1.msra.mxu0 0.0
    %934 = vmatprep.subr.mxu0 0.0
    %935 = vmatpush1.msra.mxu0 0.0
    %936 = vmatprep.subr.mxu0 0.0
    %937 = vmatpush1.msra.mxu0 0.0
    %938 = vmatprep.subr.mxu0 0.0
    %939 = vmatpush1.msra.mxu0 0.0
    %940 = vmatprep.subr.mxu0 0.0
    %941 = vmatpush1.msra.mxu0 0.0
    %942 = vmatprep.subr.mxu0 0.0
    %943 = vmatpush1.msra.mxu0 0.0
    %944 = vmatprep.subr.mxu0 0.0
    %945 = vmatpush1.msra.mxu0 0.0
    %946 = vmatprep.subr.mxu0 0.0
    %947 = vmatpush1.msra.mxu0 0.0
    %948 = vmatprep.subr.mxu0 0.0
    %949 = vmatpush1.msra.mxu0 0.0
    %950 = vmatprep.subr.mxu0 0.0
    %951 = vmatpush1.msra.mxu0 0.0
    %952 = vmatprep.subr.mxu0 0.0
    %953 = vmatpush1.msra.mxu0 0.0
    %954 = vmatprep.subr.mxu0 0.0
    %955 = vmatpush1.msra.mxu0 0.0
    %956 = vmatprep.subr.mxu0 0.0
    %957 = vmatpush1.msra.mxu0 0.0
    %958 = vmatprep.subr.mxu0 0.0
    %959 = vmatpush1.msra.mxu0 0.0
    %960 = vmatprep.subr.mxu0 0.0
    %961 = vmatpush1.msra.mxu0 0.0
    %962 = vmatprep.subr.mxu0 0.0
    %963 = vmatpush1.msra.mxu0 0.0
    %964 = vmatprep.subr.mxu0 0.0
    %965 = vmatpush1.msra.mxu0 0.0
    %966 = vmatprep.subr.mxu0 0.0
    %967 = vmatpush1.msra.mxu0 0.0
    %968 = vmatprep.subr.mxu0 0.0
    %969 = vmatpush1.msra.mxu0 0.0
    %970 = vmatprep.mubr.f32.mxu0 0.0
    %971 = vmatmul.mubr.f32.gmra.mrb[0].mxu0 %v904
    %v972 = vpop.f32.mrb[0].mxu0
    %v973 = vadd.f32 %v899, %v972
    %v974 = vpop.f32.mrb[0].mxu0
    %975 = vdwg.mxu0
    %976 = vst [vmem:[#allocation8] sm:$0xff] %v973
    // Predicated region
    $region30: #{tpu_custom_call.1} parent=1 // pred_check
      _
    $region31: #{tpu_custom_call.1} parent=1 // pred_check_branch
      %978 = sbr.rel (0) target = $region33
    $region32: #{tpu_custom_call.1} parent=1 // pred_region
      %s980 = ssub.s32 128, 128
      %981 = vsyncadd [#allocation4], %s980
      %s983 = sshll.u32 [#allocation8], 4
      %s984 = int_to_ptr.vmem [resolvable:$true] %s983
      %986 = dma.vmem_to_hbm [thread:$0]  %s984, 128, %s4, [#allocation4]
    $region33: #{tpu_custom_call.1} parent=1 // pred_fallthru
      _
    // Predicated region
    $region34: #{tpu_custom_call.1} parent=1 // pred_check
      _
    $region35: #{tpu_custom_call.1} parent=1 // pred_check_branch
      %988 = sbr.rel (0) target = $region37
    $region36: #{tpu_custom_call.1} parent=1 // pred_region
      %989 = dma.done [#allocation4], 128
    $region37: #{tpu_custom_call.1} parent=1 // pred_fallthru
      _
    %990 = vsyncpa [#allocation3], 1
    %991 = vsyncpa [#allocation6], 1
    %992 = vsyncpa [#allocation4], 1

</llo_original>
